<compile_context>
chip_gen: v7x
topology: tpu7x:2x2x1
jax: 0.10.0
libtpu: 0.0.40
codegen_flags: <defaults>
</compile_context>

<pallas_src>
import jax
import jax.numpy as jnp
from jax.experimental import pallas as pl
from jax.experimental.pallas import tpu as pltpu


# ---------------------------------------------------------------------------
# Kernels
# ---------------------------------------------------------------------------

def _touch_kernel(x_ref, o_ref):
    # DMA-free identity: output aliases the input HBM buffer; just pin the dep.
    del x_ref
    pltpu.touch(o_ref)


def _copy_kernel(x_ref, o_ref):
    # Fallback streamed copy: one lane-dense VMEM tile in, same tile out.
    o_ref[...] = x_ref[...]


# ---------------------------------------------------------------------------
# Launch paths
# ---------------------------------------------------------------------------

def _dma_free_identity(x: jax.Array) -> jax.Array:
    """Zero-byte identity launch: ANY-space refs + aliased output + touch."""
    return pl.pallas_call(
        _touch_kernel,
        out_shape=jax.ShapeDtypeStruct(x.shape, x.dtype),
        in_specs=[pl.BlockSpec(memory_space=pl.ANY)],
        out_specs=pl.BlockSpec(memory_space=pl.ANY),
        input_output_aliases={0: 0},
        compiler_params=pltpu.CompilerParams(has_side_effects=True),
    )(x)


_COPY_BLOCK_BYTES = 2 * 1024 * 1024  # ~2 MiB/block -> ~8 MiB live VMEM (double-buffered in+out)


def _streamed_copy_identity(x: jax.Array) -> jax.Array:
    """Fallback: lane-dense 1-D-grid memcpy. Only used if the DMA-free path fails."""
    total = x.size
    itemsize = x.dtype.itemsize

    # Lane-sparse shapes would force masked vst.msk stores (wasting lanes); the
    # identity needs no kernel at all there, so just return x.
    if total == 0 or total % 128 != 0:
        return x

    # Flatten to a lane-dense 2-D view: last dim a multiple of 128.
    cols = 128
    for c in (2048, 1024, 512, 256, 128):
        if total % c == 0:
            cols = c
            break
    rows = total // cols
    x2d = x.reshape(rows, cols)

    # Row-block sizing: ~2 MiB per block, multiple of 8 rows.
    max_rows = max(8, (_COPY_BLOCK_BYTES // (cols * itemsize)) // 8 * 8)
    br = rows if rows <= max_rows else max_rows
    # Ensure >= 2 row blocks when possible so v7x's two TCs both get a slab.
    if pl.cdiv(rows, br) == 1 and rows >= 16:
        br = ((rows + 1) // 2 + 7) // 8 * 8

    grid = (pl.cdiv(rows, br),)

    out2d = pl.pallas_call(
        _copy_kernel,
        out_shape=jax.ShapeDtypeStruct((rows, cols), x.dtype),
        grid=grid,
        in_specs=[pl.BlockSpec((br, cols), lambda i: (i, 0))],
        out_specs=pl.BlockSpec((br, cols), lambda i: (i, 0)),
        # Aliasing avoids a second HBM allocation when the caller donates the
        # buffer; otherwise XLA inserts a defensive copy (perf only).
        input_output_aliases={0: 0},
        compiler_params=pltpu.CompilerParams(
            dimension_semantics=("parallel",)),
        cost_estimate=pl.CostEstimate(
            flops=0, transcendentals=0,
            bytes_accessed=2 * total * itemsize),
    )(x2d)
    return out2d.reshape(x.shape)


def _identity_launch(x: jax.Array) -> jax.Array:
    try:
        return _dma_free_identity(x)
    except Exception:
        # Insurance only: if the DMA-free ANY/touch path is not supported by the
        # running JAX build, fall back to the verified streamed-copy kernel.
        return _streamed_copy_identity(x)


# ---------------------------------------------------------------------------
# Public forward
# ---------------------------------------------------------------------------

def empty_module_forward(x: jax.Array, *, force_kernel: bool = False) -> jax.Array:
    """Pallas implementation of EmptyModule.forward: y = x.

    Default: return x directly (identity is a no-op — no HBM traffic, no launch).
    force_kernel=True: issue a DMA-free Pallas launch (for kernel-path testing).
    """
    if not force_kernel:
        return x
    return _identity_launch(x)


# ---------------------------------------------------------------------------
# Self-test
# ---------------------------------------------------------------------------

if __name__ == "__main__":
    key = jax.random.PRNGKey(0)
    k1, k2 = jax.random.split(key)

    # Small NCHW input consistent with a darknet feature map.
    x = jax.random.normal(k1, (2, 4, 16, 16), dtype=jnp.float32)

    # 1) Default path: identity returns x with no kernel launch.
    y = jax.block_until_ready(empty_module_forward(x))
    assert y.shape == x.shape and y.dtype == x.dtype
    assert bool(jnp.array_equal(y, x))

    # 2) Forced kernel path: DMA-free aliased launch on the same small input.
    yk = jax.block_until_ready(empty_module_forward(x, force_kernel=True))
    assert yk.shape == x.shape and yk.dtype == x.dtype
    assert bool(jnp.array_equal(yk, x))

    # 3) Fallback streamed-copy kernel, exercised explicitly on a lane-dense
    #    tensor (1-D grid, (32, 2048) f32 blocks, 2 row blocks).
    xb = jax.random.normal(k2, (2, 16, 32, 128), dtype=jnp.float32)
    yb = jax.block_until_ready(_streamed_copy_identity(xb))
    assert yb.shape == xb.shape and yb.dtype == xb.dtype
    assert bool(jnp.array_equal(yb, xb))

    print("KERNEL_OK")
</pallas_src>

<mosaic_0001>
module attributes {stable_mosaic.version = 11 : i64} {
  func.func @_touch_kernel(%arg0: memref<2x4x16x16xf32, #tpu.memory_space<any>>, %arg1: memref<2x4x16x16xf32, #tpu.memory_space<any>>) attributes {dimension_semantics = [], scalar_prefetch = 0 : i64, scratch_operands = 0 : i64, tpu.core_type = #tpu.core_type<tc>} {
    return
  }
}

module attributes {stable_mosaic.version = 11 : i64} {
  func.func @_copy_kernel(%arg0: i32, %arg1: memref<1x2048xf32, #tpu.memory_space<vmem>>, %arg2: memref<1x2048xf32, #tpu.memory_space<vmem>>) attributes {dimension_semantics = [#tpu.dimension_semantics<parallel>], iteration_bounds = array<i64: 1>, scalar_prefetch = 0 : i64, scratch_operands = 0 : i64, tpu.core_type = #tpu.core_type<tc>, window_params = [{transform_indices = @transform_0, window_bounds = array<i64: 1, 2048>}, {transform_indices = @transform_1, window_bounds = array<i64: 1, 2048>}]} {
    %c0 = arith.constant 0 : index
    %c0_0 = arith.constant 0 : index
    %0 = vector.load %arg1[%c0, %c0_0] : memref<1x2048xf32, #tpu.memory_space<vmem>>, vector<1x2048xf32>
    %c0_1 = arith.constant 0 : index
    %c0_2 = arith.constant 0 : index
    %1 = vector.load %arg2[%c0_1, %c0_2] : memref<1x2048xf32, #tpu.memory_space<vmem>>, vector<1x2048xf32>
    tpu.vector_store %arg2[%c0_1, %c0_2], %0 {strides = array<i32>} : memref<1x2048xf32, #tpu.memory_space<vmem>>, vector<1x2048xf32>,
    return
  }
  func.func @transform_0(%arg0: i32) -> (i32, i32) {
    %c0_i32 = arith.constant 0 : i32
    %c0_i32_0 = arith.constant 0 : i32
    return %arg0, %c0_i32 : i32, i32
  }
  func.func @transform_1(%arg0: i32) -> (i32, i32) {
    %c0_i32 = arith.constant 0 : i32
    %c0_i32_0 = arith.constant 0 : i32
    return %arg0, %c0_i32 : i32, i32
  }
}

</mosaic_0001>

<llo_original>
// kernel: tpu_custom_call.1
$region0: #{tpu_custom_call.1}
  #allocation0 [shape = 'u32[]', space=smem, size = 0x4, offset = 0x4, fixed_abs, tag = 'smem constant byte address 0x4 - core index']
  #allocation1 [shape = 'u32[144,128]{1,0:T(1,128)}', space=vmem, size = 0x12000, scoped, tag = 'internal scratch']
  %s0 = inlined_call_operand.hbm [shape: f32[2,4,16,16], index: 0, kind: input, shape index: {}, may-alias: {0,1}]
  %s1 = inlined_call_operand.hbm [shape: f32[2,4,16,16], index: 1, kind: output, shape index: {}, may-alias: {0,1}]
  %s2 = sld [smem:[#allocation0]]
  $region2: #{tpu_custom_call.1} parent=0
    _
  %s4 = ssub.s32 1, %s2
  %s5 = scalar_select 0, %s4, %s2

// kernel: tpu_custom_call.1
$region0: #{tpu_custom_call.1}
  #allocation0 [shape = 'u32[]', space=smem, size = 0x4, offset = 0x4, fixed_abs, tag = 'smem constant byte address 0x4 - core index']
  #allocation1 [shape = 'u32[144,128]{1,0:T(1,128)}', space=vmem, size = 0x12000, scoped, tag = 'internal scratch']
  %s0 = inlined_call_operand.hbm [shape: f32[1,2048], index: 0, kind: input, shape index: {}, may-alias: {0,1}]
  %s1 = inlined_call_operand.hbm [shape: f32[1,2048], index: 1, kind: output, shape index: {}, may-alias: {0,1}]
  %s2 = sld [smem:[#allocation0]]
  $region18: #{tpu_custom_call.1} parent=0
    _
  %s4 = ssub.s32 1, %s2
  %s5 = scalar_select 0, %s4, %s2
  $region1: #{tpu_custom_call.1} parent=0
    #allocation2 [shape = 'u8[8192]{0}', space=vmem, size = 0x2000, scoped, tag = 'input window, operand 0, single buffered']
    #allocation3 [shape = 's32[1]{0}', space=sflag, size = 0x4, scoped, tag = 'scoped memory for tpu_custom_call.1']
    #allocation4 [shape = 's32[1]{0}', space=sflag, size = 0x4, scoped, tag = 'scoped memory for tpu_custom_call.1']
    #allocation5 [shape = 'u8[8192]{0}', space=vmem, size = 0x2000, scoped, tag = 'output window, operand 0, single buffered']
    %6 = vsyncpa [#allocation3], 0
    %7 = vsyncpa [#allocation4], 0
    // Predicated region
    $region2: #{tpu_custom_call.1} parent=1 // pred_check
      _
    $region3: #{tpu_custom_call.1} parent=1 // pred_check_branch
      %9 = sbr.rel (0) target = $region5
    $region4: #{tpu_custom_call.1} parent=1 // pred_region
      %s11 = ssub.s32 256, 256
      %12 = vsyncadd [#allocation3], %s11
      %s14 = sshll.u32 [#allocation2], 4
      %s15 = int_to_ptr.vmem [resolvable:$true] %s14
      %17 = dma.hbm_to_vmem [thread:$0]  %s0, 256, %s15, [#allocation3]
    $region5: #{tpu_custom_call.1} parent=1 // pred_fallthru
      _
    // Predicated region
    $region6: #{tpu_custom_call.1} parent=1 // pred_check
      _
    $region7: #{tpu_custom_call.1} parent=1 // pred_check_branch
      %19 = sbr.rel (0) target = $region9
    $region8: #{tpu_custom_call.1} parent=1 // pred_region
      %20 = dma.done [#allocation3], 256
    $region9: #{tpu_custom_call.1} parent=1 // pred_fallthru
      _
    %v21 = vld [vmem:[#allocation2] sm:$0xff]
    %v22 = vld [vmem:[#allocation2 + $0x8] sm:$0xff]
    %23 = vst [vmem:[#allocation5] sm:$0xff] %v21
    %24 = vst [vmem:[#allocation5 + $0x8] sm:$0xff] %v22
    // Predicated region
    $region10: #{tpu_custom_call.1} parent=1 // pred_check
      _
    $region11: #{tpu_custom_call.1} parent=1 // pred_check_branch
      %26 = sbr.rel (0) target = $region13
    $region12: #{tpu_custom_call.1} parent=1 // pred_region
      %s28 = ssub.s32 256, 256
      %29 = vsyncadd [#allocation4], %s28
      %s31 = sshll.u32 [#allocation5], 4
      %s32 = int_to_ptr.vmem [resolvable:$true] %s31
      %34 = dma.vmem_to_hbm [thread:$0]  %s32, 256, %s1, [#allocation4]
    $region13: #{tpu_custom_call.1} parent=1 // pred_fallthru
      _
    // Predicated region
    $region14: #{tpu_custom_call.1} parent=1 // pred_check
      _
    $region15: #{tpu_custom_call.1} parent=1 // pred_check_branch
      %36 = sbr.rel (0) target = $region17
    $region16: #{tpu_custom_call.1} parent=1 // pred_region
      %37 = dma.done [#allocation4], 256
    $region17: #{tpu_custom_call.1} parent=1 // pred_fallthru
      _
    %38 = vsyncpa [#allocation3], 1
    %39 = vsyncpa [#allocation4], 1

</llo_original>
